<compile_context>
chip_gen: v7x
topology: tpu7x:2x2x1
jax: 0.10.0
libtpu: 0.0.40
codegen_flags: <defaults>
</compile_context>

<pallas_src>
import jax
import jax.numpy as jnp
from jax.experimental import pallas as pl
from jax.experimental.pallas import tpu as pltpu


# ---------------------------------------------------------------------------
# Kernels
# ---------------------------------------------------------------------------

def _channel_attention_kernel(x_ref, w1_ref, w2_ref, o_ref):
    """Single-pass kernel.  x_ref/o_ref: (Bt, C, HW); w1: (Cmid, C); w2: (C, Cmid)."""
    x = x_ref[...]                                                 # input dtype
    bt = x.shape[0]

    # Global pooling over the spatial (lane) axis.  Both reductions consume the
    # same VMEM-resident block; f32 accumulation for the mean, max kept narrow.
    avg = jnp.mean(x, axis=-1, keepdims=True, dtype=jnp.float32)   # (Bt, C, 1)
    mx = jnp.max(x, axis=-1, keepdims=True).astype(jnp.float32)    # (Bt, C, 1)
    pooled = jnp.concatenate([avg, mx], axis=-1)                   # (Bt, C, 2)

    w1 = w1_ref[...]                                               # (Cmid, C), native dtype
    w2 = w2_ref[...]                                               # (C, Cmid), native dtype

    # Shared MLP on both pooled stats at once (width-2 RHS), per batch element.
    # Column orientation keeps C on sublanes end-to-end so the final broadcast
    # multiply needs no relayout.  bt is small (capped by the wrapper).
    scales = []
    for b in range(bt):
        h = jnp.maximum(
            jnp.dot(w1, pooled[b], preferred_element_type=jnp.float32), 0.0
        )                                                          # (Cmid, 2)
        y = jnp.dot(w2, h, preferred_element_type=jnp.float32)     # (C, 2)
        s = jax.nn.sigmoid(jnp.sum(y, axis=-1, keepdims=True))     # (C, 1)
        scales.append(s[None])                                     # (1, C, 1)
    scale = scales[0] if bt == 1 else jnp.concatenate(scales, axis=0)  # (Bt, C, 1)

    # Channel-wise rescale in the input dtype (lane-axis broadcast only).
    o_ref[...] = (x * scale.astype(x.dtype)).astype(o_ref.dtype)


def _make_pool_mlp_kernel(hw_total, hw_tile, need_mask):
    """Fallback pass 1: running sum/max over HW tiles, MLP+sigmoid on the last tile."""

    def kernel(x_ref, w1_ref, w2_ref, scale_ref, sum_sc, max_sc):
        k = pl.program_id(1)

        @pl.when(k == 0)
        def _():
            sum_sc[...] = jnp.zeros_like(sum_sc)
            max_sc[...] = jnp.full_like(max_sc, -jnp.inf)

        x = x_ref[...]                                             # (1, C, hw_tile)
        if need_mask:
            lane = jax.lax.broadcasted_iota(jnp.int32, x.shape, 2)
            valid = (k * hw_tile + lane) < hw_total
            x_sum = jnp.where(valid, x, jnp.zeros((), x.dtype))
            x_max = jnp.where(valid, x, jnp.full((), -jnp.inf, x.dtype))
        else:
            x_sum = x
            x_max = x

        sum_sc[...] += jnp.sum(x_sum, axis=-1, keepdims=True, dtype=jnp.float32)
        max_sc[...] = jnp.maximum(
            max_sc[...],
            jnp.max(x_max, axis=-1, keepdims=True).astype(jnp.float32))

        @pl.when(k == pl.num_programs(1) - 1)
        def _():
            avg = sum_sc[...] * (1.0 / hw_total)                   # true-HW mean
            pooled = jnp.concatenate([avg, max_sc[...]], axis=-1)  # (1, C, 2)
            h = jnp.maximum(
                jnp.dot(w1_ref[...], pooled[0],
                        preferred_element_type=jnp.float32), 0.0)  # (Cmid, 2)
            y = jnp.dot(w2_ref[...], h,
                        preferred_element_type=jnp.float32)        # (C, 2)
            scale_ref[...] = jax.nn.sigmoid(
                jnp.sum(y, axis=-1, keepdims=True))[None]          # (1, C, 1)

    return kernel


def _apply_scale_kernel(x_ref, scale_ref, o_ref):
    """Fallback pass 2: o = x * scale (per-channel, broadcast over lanes)."""
    x = x_ref[...]                                                 # (1, C, hw_tile)
    s = scale_ref[...].astype(x.dtype)                             # (1, C, 1)
    o_ref[...] = (x * s).astype(o_ref.dtype)


# ---------------------------------------------------------------------------
# Sizing helpers
# ---------------------------------------------------------------------------

_MAX_BATCH_TILE = 32      # bounds the static per-batch MLP unroll in the kernel
_MIN_BLOCK_BYTES = 1 << 20


def _cdiv(a, b):
    return (a + b - 1) // b


def _vmem_capacity_bytes():
    try:
        info = pltpu.get_tpu_info()
        cap = getattr(info, "vmem_capacity_bytes", None)
        if cap:
            return int(cap)
    except Exception:
        pass
    return 64 * 1024 * 1024   # conservative default: v7x per-TensorCore VMEM


def _clamp_vmem_limit(needed_bytes, cap_bytes):
    """Give the compiler headroom but never request more than ~90% of capacity."""
    return int(min(max(int(needed_bytes), 32 << 20), int(0.9 * cap_bytes)))


def _choose_batch_tile(B, per_batch_bytes, budget_bytes):
    """Largest divisor of B whose in+out double-buffered blocks fit the budget,
    then shrunk for pipeline depth:
      * >= min(4, B) grid steps so v7x megacore gets >= 2 steps per TensorCore,
      * up to min(8, B) steps while blocks stay >= ~1 MiB (amortizes per-step
        overhead without losing HBM-roofline efficiency)."""
    fit = max(1, min(B, budget_bytes // (4 * per_batch_bytes), _MAX_BATCH_TILE))
    divs = sorted(d for d in range(1, B + 1) if B % d == 0 and d <= fit)
    bt = divs[-1]
    while B // bt < min(4, B) and bt > 1:
        bt = max(d for d in divs if d < bt)
    while B // bt < min(8, B) and bt > 1:
        smaller = max(d for d in divs if d < bt)
        if smaller * per_batch_bytes < _MIN_BLOCK_BYTES:
            break
        bt = smaller
    return bt


def _choose_hw_tile(C, HW, itemsize, budget_bytes):
    """Lane-dense (multiple-of-128) HW tile for the two-pass fallback."""
    max_lanes = max(1, budget_bytes // (4 * C * itemsize))
    hw_tile = max(128, (max_lanes // 128) * 128)
    hw_up = _cdiv(HW, 128) * 128
    hw_tile = min(hw_tile, hw_up)
    target_steps = min(8, _cdiv(HW, 128))
    while _cdiv(HW, hw_tile) < target_steps and hw_tile > 128:
        hw_tile -= 128
    return hw_tile


def _block_spec(shape, index_map, buffer_count=None):
    """BlockSpec with optional deeper buffering (ignored if unsupported)."""
    buffered = getattr(pl, "Buffered", None)
    if buffer_count is not None and buffered is not None:
        try:
            return pl.BlockSpec(shape, index_map, pipeline_mode=buffered(buffer_count))
        except TypeError:
            pass
    return pl.BlockSpec(shape, index_map)


# ---------------------------------------------------------------------------
# Wrappers
# ---------------------------------------------------------------------------

def _single_pass(x_flat, w1, w2, budget, cap, per_batch_bytes, w_bytes):
    B, C, HW = x_flat.shape
    Cmid = w1.shape[0]

    bt = _choose_batch_tile(B, per_batch_bytes, budget)
    grid = (B // bt,)
    block_bytes = bt * per_batch_bytes

    # Deeper input buffering only on large-VMEM chips (v5e/v6e) with a long
    # enough pipeline and small enough blocks; skipped on v7x (64 MiB/TC).
    x_buffers = 3 if (cap >= (100 << 20) and grid[0] >= 4
                      and block_bytes <= (6 << 20)) else None

    vmem_limit = _clamp_vmem_limit(
        (2 + (x_buffers or 2)) * block_bytes + 4 * w_bytes + (4 << 20), cap)

    return pl.pallas_call(
        _channel_attention_kernel,
        out_shape=jax.ShapeDtypeStruct((B, C, HW), x_flat.dtype),
        grid_spec=pltpu.PrefetchScalarGridSpec(
            num_scalar_prefetch=0,
            grid=grid,
            in_specs=[
                _block_spec((bt, C, HW), lambda b: (b, 0, 0), x_buffers),
                pl.BlockSpec((Cmid, C), lambda b: (0, 0)),
                pl.BlockSpec((C, Cmid), lambda b: (0, 0)),
            ],
            out_specs=pl.BlockSpec((bt, C, HW), lambda b: (b, 0, 0)),
        ),
        compiler_params=pltpu.CompilerParams(
            dimension_semantics=("parallel",),
            vmem_limit_bytes=vmem_limit,
        ),
    )(x_flat, w1, w2)


def _two_pass(x_flat, w1, w2, budget, cap):
    """HW-tiled fallback for feature maps whose (C, HW) slab exceeds the budget."""
    B, C, HW = x_flat.shape
    Cmid = w1.shape[0]
    itemsize = jnp.dtype(x_flat.dtype).itemsize

    hw_tile = _choose_hw_tile(C, HW, itemsize, budget)
    n_hw = _cdiv(HW, hw_tile)
    need_mask = (HW % hw_tile) != 0
    block_bytes = C * hw_tile * itemsize
    w_bytes = (w1.size + w2.size) * jnp.dtype(w1.dtype).itemsize

    # Pass 1: per-channel running sum/max over HW tiles -> MLP -> sigmoid.
    scale = pl.pallas_call(
        _make_pool_mlp_kernel(HW, hw_tile, need_mask),
        out_shape=jax.ShapeDtypeStruct((B, C, 1), jnp.float32),
        grid_spec=pltpu.PrefetchScalarGridSpec(
            num_scalar_prefetch=0,
            grid=(B, n_hw),
            in_specs=[
                pl.BlockSpec((1, C, hw_tile), lambda b, k: (b, 0, k)),
                pl.BlockSpec((Cmid, C), lambda b, k: (0, 0)),
                pl.BlockSpec((C, Cmid), lambda b, k: (0, 0)),
            ],
            out_specs=pl.BlockSpec((1, C, 1), lambda b, k: (b, 0, 0)),
            scratch_shapes=[
                pltpu.VMEM((1, C, 1), jnp.float32),   # running sum
                pltpu.VMEM((1, C, 1), jnp.float32),   # running max
            ],
        ),
        compiler_params=pltpu.CompilerParams(
            dimension_semantics=("parallel", "arbitrary"),
            vmem_limit_bytes=_clamp_vmem_limit(
                2 * block_bytes + 4 * w_bytes + (4 << 20), cap),
        ),
    )(x_flat, w1, w2)

    # Pass 2: stream x again and apply the per-channel scale.
    return pl.pallas_call(
        _apply_scale_kernel,
        out_shape=jax.ShapeDtypeStruct((B, C, HW), x_flat.dtype),
        grid_spec=pltpu.PrefetchScalarGridSpec(
            num_scalar_prefetch=0,
            grid=(B, n_hw),
            in_specs=[
                pl.BlockSpec((1, C, hw_tile), lambda b, k: (b, 0, k)),
                pl.BlockSpec((1, C, 1), lambda b, k: (b, 0, 0)),
            ],
            out_specs=pl.BlockSpec((1, C, hw_tile), lambda b, k: (b, 0, k)),
        ),
        compiler_params=pltpu.CompilerParams(
            dimension_semantics=("parallel", "parallel"),
            vmem_limit_bytes=_clamp_vmem_limit(
                4 * block_bytes + (4 << 20), cap),
        ),
    )(x_flat, scale)


def channel_attention(x_nchw, w1, w2, *, vmem_block_budget_bytes=None):
    """ChannelAttention forward.

    x_nchw: (B, C, H, W); w1: (Cmid, C); w2: (C, Cmid) (squeezed 1x1 conv weights).
    """
    B, C, H, W = x_nchw.shape
    HW = H * W
    x_flat = x_nchw.reshape(B, C, HW)
    itemsize = jnp.dtype(x_nchw.dtype).itemsize

    cap = _vmem_capacity_bytes()
    if vmem_block_budget_bytes is None:
        # ~42% of per-core VMEM for the pipelined x blocks (in + out, double
        # buffered); capped so v7x keeps headroom for compiler-internal scratch.
        vmem_block_budget_bytes = min(int(0.42 * cap), 56 << 20)
    budget = int(vmem_block_budget_bytes)

    per_batch_bytes = C * HW * itemsize
    w_bytes = (w1.size + w2.size) * jnp.dtype(w1.dtype).itemsize

    # Single-pass is preferred (one HBM read + write per element).  Allow it up
    # to ~75% of capacity for a bt=1 slab; beyond that, fall back to HW tiling.
    single_pass_ceiling = max(budget, int(0.75 * cap))
    single_pass_ok = (4 * per_batch_bytes + 4 * w_bytes + (4 << 20)
                      <= single_pass_ceiling)

    if single_pass_ok:
        out_flat = _single_pass(x_flat, w1, w2, budget, cap,
                                per_batch_bytes, w_bytes)
    else:
        out_flat = _two_pass(x_flat, w1, w2, budget, cap)

    return out_flat.reshape(B, C, H, W)


def channel_attention_ref(x, w1, w2):
    """Pure-JAX reference matching the PyTorch module."""
    avg = jnp.mean(x, axis=(2, 3))                       # (B, C)
    mx = jnp.max(x, axis=(2, 3))                         # (B, C)

    def mlp(p):                                          # p: (B, C)
        return jnp.maximum(p @ w1.T, 0.0) @ w2.T         # (B, C)

    scale = jax.nn.sigmoid(mlp(avg) + mlp(mx))           # (B, C)
    return x * scale[:, :, None, None]


if __name__ == "__main__":
    # Small shapes consistent with the module: C=32, reduction_ratio=16 -> Cmid=2.
    B, C, H, W = 2, 32, 16, 16
    reduction_ratio = 16
    Cmid = C // reduction_ratio

    key = jax.random.PRNGKey(0)
    kx, k1, k2 = jax.random.split(key, 3)

    x = jax.random.normal(kx, (B, C, H, W), dtype=jnp.float32)
    w1 = jax.random.normal(k1, (Cmid, C), dtype=jnp.float32) * (2.0 / C) ** 0.5
    w2 = jax.random.normal(k2, (C, Cmid), dtype=jnp.float32) * (2.0 / Cmid) ** 0.5

    ref = channel_attention_ref(x, w1, w2)

    # Default (single-pass) path.
    out = jax.block_until_ready(channel_attention(x, w1, w2))
    assert out.shape == (B, C, H, W)
    assert jnp.allclose(out, ref, atol=1e-5, rtol=1e-5), "single-pass mismatch"

    # Force the HW-tiled two-pass fallback (tiny block budget) to verify it too.
    out_fb = jax.block_until_ready(
        channel_attention(x, w1, w2, vmem_block_budget_bytes=64 * 1024))
    assert jnp.allclose(out_fb, ref, atol=1e-5, rtol=1e-5), "fallback mismatch"

    print("KERNEL_OK")
</pallas_src>

<mosaic_0001>
module attributes {stable_mosaic.version = 11 : i64} {
  func.func @_channel_attention_kernel(%arg0: i32, %arg1: memref<1x32x256xf32, #tpu.memory_space<vmem>>, %arg2: memref<2x32xf32, #tpu.memory_space<vmem>>, %arg3: memref<32x2xf32, #tpu.memory_space<vmem>>, %arg4: memref<1x32x256xf32, #tpu.memory_space<vmem>>) attributes {dimension_semantics = [#tpu.dimension_semantics<parallel>], iteration_bounds = array<i64: 2>, scalar_prefetch = 0 : i64, scratch_operands = 0 : i64, tpu.core_type = #tpu.core_type<tc>, window_params = [{transform_indices = @transform_0, window_bounds = array<i64: 1, 32, 256>}, {pipeline_mode = #tpu.pipeline_mode<synchronous>, transform_indices = @transform_1, window_bounds = array<i64: 2, 32>}, {pipeline_mode = #tpu.pipeline_mode<synchronous>, transform_indices = @transform_2, window_bounds = array<i64: 32, 2>}, {transform_indices = @transform_3, window_bounds = array<i64: 1, 32, 256>}]} {
    %c0 = arith.constant 0 : index
    %c0_0 = arith.constant 0 : index
    %c0_1 = arith.constant 0 : index
    %0 = vector.load %arg1[%c0, %c0_0, %c0_1] : memref<1x32x256xf32, #tpu.memory_space<vmem>>, vector<1x32x256xf32>
    %cst = arith.constant dense<0.000000e+00> : vector<1x32xf32>
    %1 = vector.multi_reduction <add>, %0, %cst [2] : vector<1x32x256xf32> to vector<1x32xf32>
    %2 = vector.shape_cast %1 : vector<1x32xf32> to vector<1x32x1xf32>
    %cst_2 = arith.constant 2.560000e+02 : f32
    %3 = vector.broadcast %cst_2 : f32 to vector<1x32x1xf32>
    %4 = arith.divf %2, %3 : vector<1x32x1xf32>
    %cst_3 = arith.constant dense<0xFF800000> : vector<1x32xf32>
    %5 = vector.multi_reduction <maximumf>, %0, %cst_3 [2] : vector<1x32x256xf32> to vector<1x32xf32>
    %6 = vector.shape_cast %5 : vector<1x32xf32> to vector<1x32x1xf32>
    %7 = tpu.concatenate %4, %6 in 2 : vector<1x32x1xf32>, vector<1x32x1xf32> -> vector<1x32x2xf32>
    %c0_4 = arith.constant 0 : index
    %c0_5 = arith.constant 0 : index
    %8 = vector.load %arg2[%c0_4, %c0_5] : memref<2x32xf32, #tpu.memory_space<vmem>>, vector<2x32xf32>
    %c0_6 = arith.constant 0 : index
    %c0_7 = arith.constant 0 : index
    %9 = vector.load %arg3[%c0_6, %c0_7] : memref<32x2xf32, #tpu.memory_space<vmem>>, vector<32x2xf32>
    %10 = vector.shape_cast %7 : vector<1x32x2xf32> to vector<32x2xf32>
    %cst_8 = arith.constant dense<0.000000e+00> : vector<2x2xf32>
    %11 = tpu.matmul %8, %10, %cst_8 {dimension_numbers = #tpu.dot_dimension_numbers<[1], [0], [0], [1], [0, 0, 1, 1], [], []>} : vector<2x32xf32>, vector<32x2xf32>, vector<2x2xf32> -> vector<2x2xf32>
    %cst_9 = arith.constant 0.000000e+00 : f32
    %12 = vector.broadcast %cst_9 : f32 to vector<2x2xf32>
    %13 = arith.maximumf %11, %12 : vector<2x2xf32>
    %cst_10 = arith.constant dense<0.000000e+00> : vector<32x2xf32>
    %14 = tpu.matmul %9, %13, %cst_10 {dimension_numbers = #tpu.dot_dimension_numbers<[1], [0], [0], [1], [0, 0, 1, 1], [], []>} : vector<32x2xf32>, vector<2x2xf32>, vector<32x2xf32> -> vector<32x2xf32>
    %cst_11 = arith.constant dense<0.000000e+00> : vector<32xf32>
    %15 = vector.multi_reduction <add>, %14, %cst_11 [1] : vector<32x2xf32> to vector<32xf32>
    %16 = vector.shape_cast %15 : vector<32xf32> to vector<32x1xf32>
    %17 = arith.negf %16 : vector<32x1xf32>
    %18 = math.exp %17 : vector<32x1xf32>
    %cst_12 = arith.constant 1.000000e+00 : f32
    %19 = vector.broadcast %cst_12 : f32 to vector<32x1xf32>
    %20 = arith.addf %19, %18 : vector<32x1xf32>
    %21 = arith.divf %19, %20 : vector<32x1xf32>
    %22 = vector.shape_cast %21 : vector<32x1xf32> to vector<1x32x1xf32>
    %23 = vector.broadcast %22 : vector<1x32x1xf32> to vector<1x32x256xf32>
    %24 = arith.mulf %0, %23 : vector<1x32x256xf32>
    %c0_13 = arith.constant 0 : index
    %c0_14 = arith.constant 0 : index
    %c0_15 = arith.constant 0 : index
    %25 = vector.load %arg4[%c0_13, %c0_14, %c0_15] : memref<1x32x256xf32, #tpu.memory_space<vmem>>, vector<1x32x256xf32>
    tpu.vector_store %arg4[%c0_13, %c0_14, %c0_15], %24 {strides = array<i32>} : memref<1x32x256xf32, #tpu.memory_space<vmem>>, vector<1x32x256xf32>,
    return
  }
  func.func @transform_0(%arg0: i32) -> (i32, i32, i32) {
    %c0_i32 = arith.constant 0 : i32
    %c0_i32_0 = arith.constant 0 : i32
    %c0_i32_1 = arith.constant 0 : i32
    return %arg0, %c0_i32, %c0_i32_0 : i32, i32, i32
  }
  func.func @transform_1(%arg0: i32) -> (i32, i32) {
    %c0_i32 = arith.constant 0 : i32
    %c0_i32_0 = arith.constant 0 : i32
    %c0_i32_1 = arith.constant 0 : i32
    return %c0_i32, %c0_i32_0 : i32, i32
  }
  func.func @transform_2(%arg0: i32) -> (i32, i32) {
    %c0_i32 = arith.constant 0 : i32
    %c0_i32_0 = arith.constant 0 : i32
    %c0_i32_1 = arith.constant 0 : i32
    return %c0_i32, %c0_i32_0 : i32, i32
  }
  func.func @transform_3(%arg0: i32) -> (i32, i32, i32) {
    %c0_i32 = arith.constant 0 : i32
    %c0_i32_0 = arith.constant 0 : i32
    %c0_i32_1 = arith.constant 0 : i32
    return %arg0, %c0_i32, %c0_i32_0 : i32, i32, i32
  }
}

</mosaic_0001>

<llo_original>
// kernel: tpu_custom_call.1
$region0: #{tpu_custom_call.1}
  #allocation0 [shape = 'u32[]', space=smem, size = 0x4, offset = 0x4, fixed_abs, tag = 'smem constant byte address 0x4 - core index']
  #allocation1 [shape = 'u32[144,128]{1,0:T(1,128)}', space=vmem, size = 0x12000, scoped, tag = 'internal scratch']
  %s0 = inlined_call_operand.hbm [shape: f32[2,32,256], index: 0, kind: input, shape index: {}]
  %s1 = inlined_call_operand.vmem [shape: f32[2,32], index: 1, kind: input, shape index: {}]
  %s2 = inlined_call_operand.vmem [shape: f32[32,2], index: 2, kind: input, shape index: {}]
  %s3 = inlined_call_operand.hbm [shape: f32[2,32,256], index: 3, kind: output, shape index: {}]
  %s4 = sld [smem:[#allocation0]]
  $region49: #{tpu_custom_call.1} parent=0
    _
  %s6 = ssub.s32 1, %s4
  %s7 = scalar_select 0, %s6, %s4
  $region1: #{tpu_custom_call.1} parent=0
    #allocation2 [shape = 'u8[65536]{0}', space=vmem, size = 0x10000, scoped, tag = 'input window, operand 0']
    #allocation3 [shape = 's32[2]{0}', space=sflag, size = 0x8, scoped, tag = 'scoped memory for tpu_custom_call.1']
    #allocation4 [shape = 's32[2]{0}', space=sflag, size = 0x8, scoped, tag = 'scoped memory for tpu_custom_call.1']
    #allocation5 [shape = 'u8[65536]{0}', space=vmem, size = 0x10000, scoped, tag = 'output window, operand 0']
    %8 = vsyncpa [#allocation3], 0
    %s9 = scalar_lea.sflag [#allocation3], 1
    %10 = vsyncpa %s9, 0
    %11 = vsyncpa [#allocation4], 0
    %s12 = scalar_lea.sflag [#allocation4], 1
    %13 = vsyncpa %s12, 0
    loop: start=0, step=1, limit=4
    $region2: #{tpu_custom_call.1} parent=1 // loop_pre_header
      _
    $region3: #{tpu_custom_call.1} parent=1 // loop_header
      %s15 = sphi 0, %s19
      %p16 = scmp.ge.s32.totalorder %s15, 4
      %s25 = sphi 0, %s27
      %s28 = sphi 0, %s25
      %s29 = sphi 0, %s28
      %s45 = sphi 0, %s29
      %s49 = sphi 0, %s49
      %s51 = sphi 0, %s49
      %s52 = sphi 0, %s51
      %s66 = sphi 0, %s52
      %s70 = sphi 0, %s70
      %s72 = sphi 0, %s70
      %s73 = sphi 0, %s72
      %s87 = sphi 0, %s73
      %s93 = sphi 0, %s95
      %s96 = sphi 0, %s93
      %s97 = sphi 0, %s96
      %s113 = sphi 0, %s97
    $region4: #{tpu_custom_call.1} parent=1 // loop_header_branch
      %18 = sbr.rel (%p16) target = $region8
    $region5: #{tpu_custom_call.1} parent=1 // loop_body
      %s20 = ssub.s32 %s15, 1
      %s21 = ssub.s32 %s15, 2
      %s22 = sadd.s32 %s15, 1
      %s23 = ssub.s32 %s15, %s22
      %p24 = scmp.eq.s32.totalorder %s23, 0
      %s26 = sadd.s32 %s25, 1
      %s27 = scalar_select %p24, %s25, %s26
      %p30 = pneg %p24
      %p31 = scmp.eq.s32.totalorder %s15, 1
      %p32 = por %p30, %p31
      %p33 = scmp.ne.s32.totalorder %s25, %s28
      %p34 = scmp.eq.s32.totalorder %s15, 0
      %p35 = por %p33, %p34
      %p36 = scmp.ne.s32.totalorder %s25, %s28
      %p37 = scmp.eq.s32.totalorder %s20, 1
      %p38 = por %p36, %p37
      %p39 = scmp.ne.s32.totalorder %s28, %s29
      %p40 = scmp.eq.s32.totalorder %s20, 0
      %p41 = por %p39, %p40
      %p42 = scmp.ne.s32.totalorder %s28, %s29
      %p43 = scmp.eq.s32.totalorder %s21, 1
      %p44 = por %p42, %p43
      %p46 = scmp.ne.s32.totalorder %s29, %s45
      %p47 = scmp.eq.s32.totalorder %s21, 0
      %p48 = por %p46, %p47
      %s50 = sadd.s32 %s49, 1
      %p53 = scmp.eq.s32.totalorder %s15, 1
      %p54 = scmp.ne.s32.totalorder %s49, %s51
      %p55 = scmp.eq.s32.totalorder %s15, 0
      %p56 = por %p54, %p55
      %p57 = scmp.ne.s32.totalorder %s49, %s51
      %p58 = scmp.eq.s32.totalorder %s20, 1
      %p59 = por %p57, %p58
      %p60 = scmp.ne.s32.totalorder %s51, %s52
      %p61 = scmp.eq.s32.totalorder %s20, 0
      %p62 = por %p60, %p61
      %p63 = scmp.ne.s32.totalorder %s51, %s52
      %p64 = scmp.eq.s32.totalorder %s21, 1
      %p65 = por %p63, %p64
      %p67 = scmp.ne.s32.totalorder %s52, %s66
      %p68 = scmp.eq.s32.totalorder %s21, 0
      %p69 = por %p67, %p68
      %s71 = sadd.s32 %s70, 1
      %p74 = scmp.eq.s32.totalorder %s15, 1
      %p75 = scmp.ne.s32.totalorder %s70, %s72
      %p76 = scmp.eq.s32.totalorder %s15, 0
      %p77 = por %p75, %p76
      %p78 = scmp.ne.s32.totalorder %s70, %s72
      %p79 = scmp.eq.s32.totalorder %s20, 1
      %p80 = por %p78, %p79
      %p81 = scmp.ne.s32.totalorder %s72, %s73
      %p82 = scmp.eq.s32.totalorder %s20, 0
      %p83 = por %p81, %p82
      %p84 = scmp.ne.s32.totalorder %s72, %s73
      %p85 = scmp.eq.s32.totalorder %s21, 1
      %p86 = por %p84, %p85
      %p88 = scmp.ne.s32.totalorder %s73, %s87
      %p89 = scmp.eq.s32.totalorder %s21, 0
      %p90 = por %p88, %p89
      %s91 = ssub.s32 %s15, %s22
      %p92 = scmp.eq.s32.totalorder %s91, 0
      %s94 = sadd.s32 %s93, 1
      %s95 = scalar_select %p92, %s93, %s94
      %p98 = pneg %p92
      %p99 = scmp.eq.s32.totalorder %s15, 1
      %p100 = por %p98, %p99
      %p101 = scmp.ne.s32.totalorder %s93, %s96
      %p102 = scmp.eq.s32.totalorder %s15, 0
      %p103 = por %p101, %p102
      %p104 = scmp.ne.s32.totalorder %s93, %s96
      %p105 = scmp.eq.s32.totalorder %s20, 1
      %p106 = por %p104, %p105
      %p107 = scmp.ne.s32.totalorder %s96, %s97
      %p108 = scmp.eq.s32.totalorder %s20, 0
      %p109 = por %p107, %p108
      %p110 = scmp.ne.s32.totalorder %s96, %s97
      %p111 = scmp.eq.s32.totalorder %s21, 1
      %p112 = por %p110, %p111
      %p114 = scmp.ne.s32.totalorder %s97, %s113
      %p115 = scmp.eq.s32.totalorder %s21, 0
      %p116 = por %p114, %p115
      %p117 = scmp.le.s32.totalorder 1, %s15
      %p118 = scmp.lt.s32.totalorder %s15, 3
      %p119 = pnand %p117, %p118
      %p120 = pneg %p119
      // Predicated region
      $region9: #{tpu_custom_call.1} parent=5 // pred_check
        _
      $region10: #{tpu_custom_call.1} parent=5 // pred_check_branch
        %122 = sbr.rel (%p119) target = $region12
      $region11: #{tpu_custom_call.1} parent=5 // pred_region
        %s123 = ssub.s32 %s15, 1
        // Predicated region
        $region13: #{tpu_custom_call.1} parent=11 // pred_check
          %p124 = pneg %p62
        $region14: #{tpu_custom_call.1} parent=11 // pred_check_branch
          %126 = sbr.rel (%p124) target = $region16
        $region15: #{tpu_custom_call.1} parent=11 // pred_region
          _
        $region16: #{tpu_custom_call.1} parent=11 // pred_fallthru
          _
        // Predicated region
        $region17: #{tpu_custom_call.1} parent=11 // pred_check
          %p127 = pneg %p83
        $region18: #{tpu_custom_call.1} parent=11 // pred_check_branch
          %129 = sbr.rel (%p127) target = $region20
        $region19: #{tpu_custom_call.1} parent=11 // pred_region
          _
        $region20: #{tpu_custom_call.1} parent=11 // pred_fallthru
          _
      $region12: #{tpu_custom_call.1} parent=5 // pred_fallthru
        _
      %p130 = scmp.lt.s32.totalorder %s15, 2
      // Predicated region
      $region21: #{tpu_custom_call.1} parent=5 // pred_check
        %p131 = pneg %p130
      $region22: #{tpu_custom_call.1} parent=5 // pred_check_branch
        %133 = sbr.rel (%p131) target = $region24
      $region23: #{tpu_custom_call.1} parent=5 // pred_region
        // Predicated region
        $region25: #{tpu_custom_call.1} parent=23 // pred_check
          %p134 = pneg %p35
        $region26: #{tpu_custom_call.1} parent=23 // pred_check_branch
          %136 = sbr.rel (%p134) target = $region28
        $region27: #{tpu_custom_call.1} parent=23 // pred_region
          %s137 = sand.u32 %s25, 1
          %s138 = scalar_lea.sflag [#allocation3], %s137
          %s139 = sand.u32 %s25, 1
          %s140 = smul.addr %s139, 64
          %s141 = scalar_lea.vmem [#allocation2], %s140
          %s143 = ssub.s32 1024, 1024
          %144 = vsyncadd %s138, %s143
          %s145 = smul.addr %s15, 8
          %s146 = smul.addr %s145, 128
          %s147 = scalar_lea.hbm %s0, %s146
          %s148 = sshll.u32 %s141, 4
          %s149 = int_to_ptr.vmem [resolvable:$true] %s148
          %154 = dma.hbm_to_vmem [thread:$0]  %s147, 1024, %s149, %s138, 256, 256, 16
        $region28: #{tpu_custom_call.1} parent=23 // pred_fallthru
          _
      $region24: #{tpu_custom_call.1} parent=5 // pred_fallthru
        _
      %p155 = scmp.le.s32.totalorder 1, %s15
      %p156 = scmp.lt.s32.totalorder %s15, 3
      %p157 = pnand %p155, %p156
      %p158 = pneg %p157
      // Predicated region
      $region29: #{tpu_custom_call.1} parent=5 // pred_check
        _
      $region30: #{tpu_custom_call.1} parent=5 // pred_check_branch
        %160 = sbr.rel (%p157) target = $region32
      $region31: #{tpu_custom_call.1} parent=5 // pred_region
        %s161 = ssub.s32 %s15, 1
        %s162 = sand.u32 %s28, 1
        %s163 = scalar_lea.sflag [#allocation3], %s162
        %s164 = sand.u32 %s28, 1
        %s165 = smul.addr %s164, 64
        %s166 = scalar_lea.vmem [#allocation2], %s165
        // Predicated region
        $region33: #{tpu_custom_call.1} parent=31 // pred_check
          %p167 = pneg %p41
        $region34: #{tpu_custom_call.1} parent=31 // pred_check_branch
          %169 = sbr.rel (%p167) target = $region36
        $region35: #{tpu_custom_call.1} parent=31 // pred_region
          %170 = dma.done %s163, 1024
        $region36: #{tpu_custom_call.1} parent=31 // pred_fallthru
          _
        %s171 = sand.u32 %s28, 1
        %s172 = scalar_lea.sflag [#allocation3], %s171
        %s173 = sand.u32 %s28, 1
        %s174 = smul.addr %s173, 64
        %s175 = scalar_lea.vmem [#allocation2], %s174
        %p176 = pneg %p41
        %p177 = pneg %p38
        %p178 = pneg %p62
        %p179 = pneg %p59
        %p180 = pneg %p83
        %p181 = pneg %p80
        %p182 = pneg %p109
        %p183 = pneg %p106
        %s184 = sand.u32 %s96, 1
        %s185 = scalar_lea.sflag [#allocation4], %s184
        %s186 = sand.u32 %s96, 1
        %s187 = smul.addr %s186, 64
        %s188 = scalar_lea.vmem [#allocation5], %s187
        %v189 = vld [vmem:[%s166] sm:$0xff]
        %v190 = vld [vmem:[%s166 + $0x8] sm:$0xff]
        %v191 = vld [vmem:[%s166 + $0x10] sm:$0xff]
        %v192 = vld [vmem:[%s166 + $0x18] sm:$0xff]
        %v193 = vld [vmem:[%s166 + $0x20] sm:$0xff]
        %v194 = vld [vmem:[%s166 + $0x28] sm:$0xff]
        %v195 = vld [vmem:[%s166 + $0x30] sm:$0xff]
        %v196 = vld [vmem:[%s166 + $0x38] sm:$0xff]
        %v197 = vadd.f32 %v189, %v190
        %198 = vadd.xlane.f32.xlu0 %v197
        %v199 = vpop.xlane.xlu0 %198
        %v200 = vadd.f32 %v191, %v192
        %201 = vadd.xlane.f32.xlu0 %v200
        %v202 = vpop.xlane.xlu0 %201
        %v203 = vadd.f32 %v193, %v194
        %204 = vadd.xlane.f32.xlu0 %v203
        %v205 = vpop.xlane.xlu0 %204
        %v206 = vadd.f32 %v195, %v196
        %207 = vadd.xlane.f32.xlu0 %v206
        %v208 = vpop.xlane.xlu0 %207
        %v209 = vrcp.pop 256.0
        %v210 = vmul.f32 %v199, %v209
        %v211 = vmul.f32 %v202, %v209
        %v212 = vmul.f32 %v205, %v209
        %v213 = vmul.f32 %v208, %v209
        %v214 = vmax.f32 %v189, %v190
        %215 = vmax.xlane.f32.xlu0 %v214
        %v216 = vpop.xlane.xlu0 %215
        %v217 = vmax.f32 %v191, %v192
        %218 = vmax.xlane.f32.xlu0 %v217
        %v219 = vpop.xlane.xlu0 %218
        %v220 = vmax.f32 %v193, %v194
        %221 = vmax.xlane.f32.xlu0 %v220
        %v222 = vpop.xlane.xlu0 %221
        %v223 = vmax.f32 %v195, %v196
        %224 = vmax.xlane.f32.xlu0 %v223
        %v225 = vpop.xlane.xlu0 %224
        %vm226 = vcmask 7168
        %v227 = vsel %vm226, %v210, %v216
        %v228 = vsel %vm226, %v211, %v219
        %v229 = vsel %vm226, %v212, %v222
        %v230 = vsel %vm226, %v213, %v225
        %v231 = vld [vmem:[%s1] sm:$0x3]
        %v232 = vld [vmem:[%s2] sm:$0xff]
        %v233 = vld [vmem:[%s2 + $0x8] sm:$0xff]
        %v234 = vld [vmem:[%s2 + $0x10] sm:$0xff]
        %v235 = vld [vmem:[%s2 + $0x18] sm:$0xff]
        %vm236 = vcmask 261120
        %v238 = vsel %vm236, %v231, 0
        %240 = vmatprep.subr.mxu0 0.0
        %241 = vmatpush1.msra.mxu0 %v227
        %242 = vmatprep.subr.mxu0 0.0
        %243 = vmatpush1.msra.mxu0 %v228
        %244 = vmatprep.subr.mxu0 0.0
        %245 = vmatpush1.msra.mxu0 %v229
        %246 = vmatprep.subr.mxu0 0.0
        %247 = vmatpush1.msra.mxu0 %v230
        %248 = vmatprep.subr.mxu0 0.0
        %249 = vmatpush1.msra.mxu0 0.0
        %250 = vmatprep.subr.mxu0 0.0
        %251 = vmatpush1.msra.mxu0 0.0
        %252 = vmatprep.subr.mxu0 0.0
        %253 = vmatpush1.msra.mxu0 0.0
        %254 = vmatprep.subr.mxu0 0.0
        %255 = vmatpush1.msra.mxu0 0.0
        %256 = vmatprep.subr.mxu0 0.0
        %257 = vmatpush1.msra.mxu0 0.0
        %258 = vmatprep.subr.mxu0 0.0
        %259 = vmatpush1.msra.mxu0 0.0
        %260 = vmatprep.subr.mxu0 0.0
        %261 = vmatpush1.msra.mxu0 0.0
        %262 = vmatprep.subr.mxu0 0.0
        %263 = vmatpush1.msra.mxu0 0.0
        %264 = vmatprep.subr.mxu0 0.0
        %265 = vmatpush1.msra.mxu0 0.0
        %266 = vmatprep.subr.mxu0 0.0
        %267 = vmatpush1.msra.mxu0 0.0
        %268 = vmatprep.subr.mxu0 0.0
        %269 = vmatpush1.msra.mxu0 0.0
        %270 = vmatprep.subr.mxu0 0.0
        %271 = vmatpush1.msra.mxu0 0.0
        %272 = vmatprep.subr.mxu0 0.0
        %273 = vmatpush1.msra.mxu0 0.0
        %274 = vmatprep.subr.mxu0 0.0
        %275 = vmatpush1.msra.mxu0 0.0
        %276 = vmatprep.subr.mxu0 0.0
        %277 = vmatpush1.msra.mxu0 0.0
        %278 = vmatprep.subr.mxu0 0.0
        %279 = vmatpush1.msra.mxu0 0.0
        %280 = vmatprep.subr.mxu0 0.0
        %281 = vmatpush1.msra.mxu0 0.0
        %282 = vmatprep.subr.mxu0 0.0
        %283 = vmatpush1.msra.mxu0 0.0
        %284 = vmatprep.subr.mxu0 0.0
        %285 = vmatpush1.msra.mxu0 0.0
        %286 = vmatprep.subr.mxu0 0.0
        %287 = vmatpush1.msra.mxu0 0.0
        %288 = vmatprep.subr.mxu0 0.0
        %289 = vmatpush1.msra.mxu0 0.0
        %290 = vmatprep.subr.mxu0 0.0
        %291 = vmatpush1.msra.mxu0 0.0
        %292 = vmatprep.subr.mxu0 0.0
        %293 = vmatpush1.msra.mxu0 0.0
        %294 = vmatprep.subr.mxu0 0.0
        %295 = vmatpush1.msra.mxu0 0.0
        %296 = vmatprep.subr.mxu0 0.0
        %297 = vmatpush1.msra.mxu0 0.0
        %298 = vmatprep.subr.mxu0 0.0
        %299 = vmatpush1.msra.mxu0 0.0
        %300 = vmatprep.subr.mxu0 0.0
        %301 = vmatpush1.msra.mxu0 0.0
        %302 = vmatprep.subr.mxu0 0.0
        %303 = vmatpush1.msra.mxu0 0.0
        %304 = vmatprep.mubr.f32.mxu0 0.0
        %305 = vmatmul.mubr.f32.gmra.mrb[0].mxu0 %v238
        %v306 = vpop.f32.mrb[0].mxu0
        %v307 = vadd.f32 0.0, %v306
        %v308 = vpop.f32.mrb[0].mxu0
        %309 = vdwg.mxu0
        %v310 = vmax.f32 %v307, 0.0
        %vm311 = vcmask 15360
        %v313 = vsel %vm311, %v232, 0
        %v316 = vsel %vm311, %v233, 0
        %v319 = vsel %vm311, %v234, 0
        %v322 = vsel %vm311, %v235, 0
        %vm324 = vcmask 1041408
        %v326 = vsel %vm324, %v310, 0
        %328 = vmatprep.subr.mxu0 0.0
        %329 = vmatpush1.msra.mxu0 %v326
        %330 = vmatprep.subr.mxu0 0.0
        %331 = vmatpush1.msra.mxu0 0.0
        %332 = vmatprep.subr.mxu0 0.0
        %333 = vmatpush1.msra.mxu0 0.0
        %334 = vmatprep.subr.mxu0 0.0
        %335 = vmatpush1.msra.mxu0 0.0
        %336 = vmatprep.subr.mxu0 0.0
        %337 = vmatpush1.msra.mxu0 0.0
        %338 = vmatprep.subr.mxu0 0.0
        %339 = vmatpush1.msra.mxu0 0.0
        %340 = vmatprep.subr.mxu0 0.0
        %341 = vmatpush1.msra.mxu0 0.0
        %342 = vmatprep.subr.mxu0 0.0
        %343 = vmatpush1.msra.mxu0 0.0
        %344 = vmatprep.subr.mxu0 0.0
        %345 = vmatpush1.msra.mxu0 0.0
        %346 = vmatprep.subr.mxu0 0.0
        %347 = vmatpush1.msra.mxu0 0.0
        %348 = vmatprep.subr.mxu0 0.0
        %349 = vmatpush1.msra.mxu0 0.0
        %350 = vmatprep.subr.mxu0 0.0
        %351 = vmatpush1.msra.mxu0 0.0
        %352 = vmatprep.subr.mxu0 0.0
        %353 = vmatpush1.msra.mxu0 0.0
        %354 = vmatprep.subr.mxu0 0.0
        %355 = vmatpush1.msra.mxu0 0.0
        %356 = vmatprep.subr.mxu0 0.0
        %357 = vmatpush1.msra.mxu0 0.0
        %358 = vmatprep.subr.mxu0 0.0
        %359 = vmatpush1.msra.mxu0 0.0
        %360 = vmatprep.subr.mxu0 0.0
        %361 = vmatpush1.msra.mxu0 0.0
        %362 = vmatprep.subr.mxu0 0.0
        %363 = vmatpush1.msra.mxu0 0.0
        %364 = vmatprep.subr.mxu0 0.0
        %365 = vmatpush1.msra.mxu0 0.0
        %366 = vmatprep.subr.mxu0 0.0
        %367 = vmatpush1.msra.mxu0 0.0
        %368 = vmatprep.subr.mxu0 0.0
        %369 = vmatpush1.msra.mxu0 0.0
        %370 = vmatprep.subr.mxu0 0.0
        %371 = vmatpush1.msra.mxu0 0.0
        %372 = vmatprep.subr.mxu0 0.0
        %373 = vmatpush1.msra.mxu0 0.0
        %374 = vmatprep.subr.mxu0 0.0
        %375 = vmatpush1.msra.mxu0 0.0
        %376 = vmatprep.subr.mxu0 0.0
        %377 = vmatpush1.msra.mxu0 0.0
        %378 = vmatprep.subr.mxu0 0.0
        %379 = vmatpush1.msra.mxu0 0.0
        %380 = vmatprep.subr.mxu0 0.0
        %381 = vmatpush1.msra.mxu0 0.0
        %382 = vmatprep.subr.mxu0 0.0
        %383 = vmatpush1.msra.mxu0 0.0
        %384 = vmatprep.subr.mxu0 0.0
        %385 = vmatpush1.msra.mxu0 0.0
        %386 = vmatprep.subr.mxu0 0.0
        %387 = vmatpush1.msra.mxu0 0.0
        %388 = vmatprep.subr.mxu0 0.0
        %389 = vmatpush1.msra.mxu0 0.0
        %390 = vmatprep.subr.mxu0 0.0
        %391 = vmatpush1.msra.mxu0 0.0
        %392 = vmatprep.mubr.f32.mxu0 0.0
        %393 = vmatmul.mubr.f32.gmra.mrb[0].mxu0 %v313
        %v394 = vpop.f32.mrb[0].mxu0
        %v395 = vadd.f32 0.0, %v394
        %v396 = vpop.f32.mrb[0].mxu0
        %397 = vmatprep.mubr.f32.mxu0 0.0
        %398 = vmatmul.mubr.f32.gmra.mrb[0].mxu0 %v316
        %v399 = vpop.f32.mrb[0].mxu0
        %v400 = vadd.f32 0.0, %v399
        %v401 = vpop.f32.mrb[0].mxu0
        %402 = vmatprep.mubr.f32.mxu0 0.0
        %403 = vmatmul.mubr.f32.gmra.mrb[0].mxu0 %v319
        %v404 = vpop.f32.mrb[0].mxu0
        %v405 = vadd.f32 0.0, %v404
        %v406 = vpop.f32.mrb[0].mxu0
        %407 = vmatprep.mubr.f32.mxu0 0.0
        %408 = vmatmul.mubr.f32.gmra.mrb[0].mxu0 %v322
        %v409 = vpop.f32.mrb[0].mxu0
        %v410 = vadd.f32 0.0, %v409
        %v411 = vpop.f32.mrb[0].mxu0
        %412 = vdwg.mxu0
        %v413 = vsel %vm311, %v395, 0.0
        %414 = vadd.xlane.f32.xlu0 %v413
        %v415 = vpop.xlane.xlu0 %414
        %v416 = vsel %vm311, %v400, 0.0
        %417 = vadd.xlane.f32.xlu0 %v416
        %v418 = vpop.xlane.xlu0 %417
        %v419 = vsel %vm311, %v405, 0.0
        %420 = vadd.xlane.f32.xlu0 %v419
        %v421 = vpop.xlane.xlu0 %420
        %v422 = vsel %vm311, %v410, 0.0
        %423 = vadd.xlane.f32.xlu0 %v422
        %v424 = vpop.xlane.xlu0 %423
        %v425 = vxor.u32 %v415, 2147483648
        %v426 = vxor.u32 %v418, 2147483648
        %v427 = vxor.u32 %v421, 2147483648
        %v428 = vxor.u32 %v424, 2147483648
        %v429 = vmul.f32 %v425, 1.442695
        %v430 = vpow.pop %v429
        %v431 = vmul.f32 %v426, 1.442695
        %v432 = vpow.pop %v431
        %v433 = vmul.f32 %v427, 1.442695
        %v434 = vpow.pop %v433
        %v435 = vmul.f32 %v428, 1.442695
        %v436 = vpow.pop %v435
        %v437 = vadd.f32 %v430, 1.0
        %v438 = vadd.f32 %v432, 1.0
        %v439 = vadd.f32 %v434, 1.0
        %v440 = vadd.f32 %v436, 1.0
        %v441 = vrcp.pop %v437
        %v442 = vmul.f32 1.0, %v441
        %v443 = vrcp.pop %v438
        %v444 = vmul.f32 1.0, %v443
        %v445 = vrcp.pop %v439
        %v446 = vmul.f32 1.0, %v445
        %v447 = vrcp.pop %v440
        %v448 = vmul.f32 1.0, %v447
        %v449 = vmul.f32 %v189, %v442
        %v450 = vmul.f32 %v190, %v442
        %v451 = vmul.f32 %v191, %v444
        %v452 = vmul.f32 %v192, %v444
        %v453 = vmul.f32 %v193, %v446
        %v454 = vmul.f32 %v194, %v446
        %v455 = vmul.f32 %v195, %v448
        %v456 = vmul.f32 %v196, %v448
        %457 = vst [vmem:[%s188] sm:$0xff] %v449
        %458 = vst [vmem:[%s188 + $0x8] sm:$0xff] %v450
        %459 = vst [vmem:[%s188 + $0x10] sm:$0xff] %v451
        %460 = vst [vmem:[%s188 + $0x18] sm:$0xff] %v452
        %461 = vst [vmem:[%s188 + $0x20] sm:$0xff] %v453
        %462 = vst [vmem:[%s188 + $0x28] sm:$0xff] %v454
        %463 = vst [vmem:[%s188 + $0x30] sm:$0xff] %v455
        %464 = vst [vmem:[%s188 + $0x38] sm:$0xff] %v456
        %s465 = sand.u32 %s96, 1
        %s466 = scalar_lea.sflag [#allocation4], %s465
        %s467 = sand.u32 %s96, 1
        %s468 = smul.addr %s467, 64
        %s469 = scalar_lea.vmem [#allocation5], %s468
        // Predicated region
        $region37: #{tpu_custom_call.1} parent=31 // pred_check
          %p470 = pneg %p106
        $region38: #{tpu_custom_call.1} parent=31 // pred_check_branch
          %472 = sbr.rel (%p470) target = $region40
        $region39: #{tpu_custom_call.1} parent=31 // pred_region
          %s474 = ssub.s32 1024, 1024
          %475 = vsyncadd %s466, %s474
          %s476 = smul.addr %s20, 8
          %s477 = smul.addr %s476, 128
          %s478 = scalar_lea.hbm %s3, %s477
          %s479 = sshll.u32 %s469, 4
          %s480 = int_to_ptr.vmem [resolvable:$true] %s479
          %485 = dma.vmem_to_hbm [thread:$0]  %s480, 1024, %s478, %s466, 256, 256, 16
        $region40: #{tpu_custom_call.1} parent=31 // pred_fallthru
          _
      $region32: #{tpu_custom_call.1} parent=5 // pred_fallthru
        _
      %p486 = scmp.le.s32.totalorder 2, %s15
      // Predicated region
      $region41: #{tpu_custom_call.1} parent=5 // pred_check
        %p487 = pneg %p486
      $region42: #{tpu_custom_call.1} parent=5 // pred_check_branch
        %489 = sbr.rel (%p487) target = $region44
      $region43: #{tpu_custom_call.1} parent=5 // pred_region
        %s490 = ssub.s32 %s15, 2
        // Predicated region
        $region45: #{tpu_custom_call.1} parent=43 // pred_check
          %p491 = pneg %p112
        $region46: #{tpu_custom_call.1} parent=43 // pred_check_branch
          %493 = sbr.rel (%p491) target = $region48
        $region47: #{tpu_custom_call.1} parent=43 // pred_region
          %s494 = sand.u32 %s97, 1
          %s495 = scalar_lea.sflag [#allocation4], %s494
          %s496 = sand.u32 %s97, 1
          %s497 = smul.addr %s496, 64
          %s498 = scalar_lea.vmem [#allocation5], %s497
          %499 = dma.done %s495, 1024
        $region48: #{tpu_custom_call.1} parent=43 // pred_fallthru
          _
      $region44: #{tpu_custom_call.1} parent=5 // pred_fallthru
        _
    $region6: #{tpu_custom_call.1} parent=1 // loop_footer
      %s19 = sadd.s32 1, %s15
    $region7: #{tpu_custom_call.1} parent=1 // loop_footer_branch
      %14 = sbr.rel target = $region3
    $region8: #{tpu_custom_call.1} parent=1 // loop_exit
      _
    %500 = vsyncpa [#allocation3], 1
    %s501 = scalar_lea.sflag [#allocation3], 1
    %502 = vsyncpa %s501, 1
    %503 = vsyncpa [#allocation4], 1
    %s504 = scalar_lea.sflag [#allocation4], 1
    %505 = vsyncpa %s504, 1

</llo_original>
